<compile_context>
chip_gen: v7x
topology: tpu7x:2x2x1
jax: 0.10.0
libtpu: 0.0.40
codegen_flags: <defaults>
</compile_context>

<pallas_src>
import functools

import jax
import jax.numpy as jnp
from jax.experimental import pallas as pl
from jax.experimental.pallas import tpu as pltpu


LEAKY_SLOPE = 0.01  # nn.LeakyReLU default
BN_EPS = 1e-5       # nn.BatchNorm1d default


def _round_up(x, m):
    return ((x + m - 1) // m) * m


# -----------------------------------------------------------------------------
# Kernel: 8 x (bf16 matmul on MXU, f32 accumulate, bias + activation)
# -----------------------------------------------------------------------------
def _sae_kernel(x_ref,
                w0, w1, w2, w3, w4, w5, w6, w7,
                b_ref,
                out_ref,
                *, out_dims):
    ws = (w0, w1, w2, w3, w4, w5, w6, w7)

    h = x_ref[...].astype(jnp.bfloat16)  # (TB, nf) -> bf16 once

    # Layers 0..6: Linear (+Dropout identity / folded BN) -> LeakyReLU (bf16)
    for i in range(7):
        z = jnp.dot(h, ws[i][...], preferred_element_type=jnp.float32)
        z = z + b_ref[i:i + 1, :out_dims[i]]
        zb = z.astype(jnp.bfloat16)          # cast once before activation
        h = jnp.maximum(zb, LEAKY_SLOPE * zb)  # LeakyReLU as mul+max

    # Final layer: Linear -> (folded BN) -> ReLU, f32 output
    z = jnp.dot(h, ws[7][...], preferred_element_type=jnp.float32)
    z = z + b_ref[7:8, :out_dims[7]]
    out_ref[...] = jnp.maximum(z, 0.0)


# -----------------------------------------------------------------------------
# Parameter construction (matches the PyTorch module's shapes, eval mode)
# -----------------------------------------------------------------------------
def init_params(key, n_features, z_dim):
    enc_dims = [(n_features, 200), (200, 100), (100, 50), (50, z_dim)]
    dec_dims = [(z_dim, 50), (50, 100), (100, 200), (200, n_features)]
    bn_dims = [50, 100, 200, n_features]

    def linear(key, fan_in, fan_out):
        kw, kb = jax.random.split(key)
        bound = 1.0 / jnp.sqrt(fan_in)
        # stored as (in, out) — i.e. PyTorch weight.T
        w = jax.random.uniform(kw, (fan_in, fan_out), jnp.float32, -bound, bound)
        b = jax.random.uniform(kb, (1, fan_out), jnp.float32, -bound, bound)
        return w, b

    keys = jax.random.split(key, 12)
    params = {
        "enc": [linear(keys[i], fi, fo) for i, (fi, fo) in enumerate(enc_dims)],
        "dec": [linear(keys[4 + i], fi, fo) for i, (fi, fo) in enumerate(dec_dims)],
    }

    bns = []
    for i, d in enumerate(bn_dims):
        k1, k2, k3, k4 = jax.random.split(keys[8 + i], 4)
        gamma = 1.0 + 0.1 * jax.random.normal(k1, (1, d), jnp.float32)
        beta = 0.1 * jax.random.normal(k2, (1, d), jnp.float32)
        running_mean = 0.1 * jax.random.normal(k3, (1, d), jnp.float32)
        running_var = 1.0 + 0.1 * jnp.abs(jax.random.normal(k4, (1, d), jnp.float32))
        # fold BN into affine scale/shift: y = (x - mean)/sqrt(var+eps)*gamma + beta
        scale = gamma / jnp.sqrt(running_var + BN_EPS)
        shift = beta - running_mean * scale
        bns.append((scale, shift))
    params["bn"] = bns
    return params


def _fold_decoder(dec, bns):
    """Fold the 4 BN affines into the decoder Linear weights/biases (exact in f32)."""
    (w0, b0), (w1, b1), (w2, b2), (w3, b3) = dec
    (s0, t0), (s1, t1), (s2, t2), (s3, t3) = bns
    # bn0/1/2 sit after a LeakyReLU -> fold into the *following* Linear:
    #   (h*s + t) @ W + b = h @ (diag(s) W) + (t @ W + b)
    w1f = s0.reshape(-1, 1) * w1
    b1f = t0 @ w1 + b1
    w2f = s1.reshape(-1, 1) * w2
    b2f = t1 @ w2 + b2
    w3f = s2.reshape(-1, 1) * w3
    b3f = t2 @ w3 + b3
    # bn3 directly follows Linear 3 (no nonlinearity) -> fold on the output side:
    #   (h @ W + b)*s + t = h @ (W*s) + (b*s + t)
    w3f = w3f * s3
    b3f = b3f * s3 + t3
    return [(w0, b0), (w1f, b1f), (w2f, b2f), (w3f, b3f)]


def prepare_params(params):
    """BN-fold + pad + bf16-cast.

    Returns (weights, bias_pack, out_dims):
      weights  : 8 bf16 arrays of shape (in_padded, out_padded); hidden dims are
                 padded to multiples of 128, the first input dim only to a
                 multiple of 8 (matches the unpadded x), the final output dim is
                 left at n_features (written directly, no post-slice pass).
      bias_pack: single (8, max_out) f32 array with all biases.
      out_dims : static tuple of per-layer (padded) output widths.
    """
    layers = list(params["enc"]) + _fold_decoder(params["dec"], params["bn"])
    n_layers = len(layers)
    nf = layers[0][0].shape[0]

    prev_p = _round_up(nf, 8)  # input width of layer 0 (x, possibly 8-padded)
    ws, bs, out_dims = [], [], []
    for idx, (w, b) in enumerate(layers):
        fin, fout = w.shape
        fout_p = fout if idx == n_layers - 1 else _round_up(fout, 128)
        wp = jnp.zeros((prev_p, fout_p), jnp.float32).at[:fin, :fout].set(w)
        bp = jnp.zeros((fout_p,), jnp.float32).at[:fout].set(b.reshape(-1))
        ws.append(wp.astype(jnp.bfloat16))
        bs.append(bp)
        out_dims.append(int(fout_p))
        prev_p = fout_p

    bmax = max(max(out_dims), 128)
    bias_pack = jnp.zeros((n_layers, bmax), jnp.float32)
    for i, bp in enumerate(bs):
        bias_pack = bias_pack.at[i, :bp.shape[0]].set(bp)
    return tuple(ws), bias_pack, tuple(out_dims)


# -----------------------------------------------------------------------------
# Wrapper: batch-tiled pallas_call with weights VMEM-resident across the grid
# -----------------------------------------------------------------------------
def _pick_batch_tile(batch8):
    """Large batch tiles amortize grid-step + MXU push/drain overhead; keep the
    grid length >= 2 for large batches so both v7x TensorCores are used."""
    if batch8 <= 256:
        return batch8
    tb = 1024
    while tb > 256 and tb * 2 > batch8:
        tb //= 2
    return tb


@functools.partial(jax.jit, static_argnames=("out_dims",))
def sae_forward(x, weights, bias_pack, *, out_dims):
    batch, nf = x.shape
    nf8 = _round_up(nf, 8)
    batch8 = _round_up(batch, 8)

    # Only materialize a padded copy when strictly required (feature dim or
    # batch dim not a multiple of 8); the common case streams x unpadded.
    if nf8 != nf or batch8 != batch:
        xp = jnp.zeros((batch8, nf8), x.dtype).at[:batch, :nf].set(x)
    else:
        xp = x

    tb = _pick_batch_tile(batch8)
    grid = (pl.cdiv(batch8, tb),)
    out_f = out_dims[-1]

    in_specs = [pl.BlockSpec((tb, nf8), lambda i: (i, 0))]
    # Constant block index -> weights / bias pack stay resident in VMEM across
    # all batch tiles (fetched once).
    in_specs += [pl.BlockSpec(w.shape, lambda i: (0, 0)) for w in weights]
    in_specs += [pl.BlockSpec(bias_pack.shape, lambda i: (0, 0))]

    kernel = functools.partial(_sae_kernel, out_dims=out_dims)
    out = pl.pallas_call(
        kernel,
        out_shape=jax.ShapeDtypeStruct((batch8, out_f), jnp.float32),
        grid=grid,
        in_specs=in_specs,
        out_specs=pl.BlockSpec((tb, out_f), lambda i: (i, 0)),
        compiler_params=pltpu.CompilerParams(
            dimension_semantics=("parallel",)),
    )(xp, *weights, bias_pack)

    return out[:batch] if batch8 != batch else out


# -----------------------------------------------------------------------------
# Pure-JAX f32 reference (unfolded, unpadded) for tolerance checking
# -----------------------------------------------------------------------------
def _leaky_ref(h):
    return jnp.where(h >= 0, h, LEAKY_SLOPE * h)


def sae_reference(x, params):
    h = x
    for w, b in params["enc"]:
        h = _leaky_ref(h @ w + b)
    (s0, t0), (s1, t1), (s2, t2), (s3, t3) = params["bn"]
    (w0, b0), (w1, b1), (w2, b2), (w3, b3) = params["dec"]
    h = _leaky_ref(h @ w0 + b0)
    h = h * s0 + t0
    h = _leaky_ref(h @ w1 + b1)
    h = h * s1 + t1
    h = _leaky_ref(h @ w2 + b2)
    h = h * s2 + t2
    h = h @ w3 + b3
    h = h * s3 + t3
    return jnp.maximum(h, 0.0)


if __name__ == "__main__":
    n_features = 32
    z_dim = 8
    batch = 8

    key = jax.random.PRNGKey(0)
    k_params, k_x = jax.random.split(key)
    params = init_params(k_params, n_features, z_dim)
    x = jax.random.normal(k_x, (batch, n_features), jnp.float32)

    weights, bias_pack, out_dims = prepare_params(params)
    out = sae_forward(x, weights, bias_pack, out_dims=out_dims)
    jax.block_until_ready(out)

    assert out.shape == (batch, n_features)
    assert out.dtype == jnp.float32
    # ReLU output must be non-negative
    assert bool(jnp.all(out >= 0.0))

    # bf16-operand / f32-accumulate kernel vs pure-f32 reference
    ref = sae_reference(x, params)
    max_err = float(jnp.max(jnp.abs(out - ref)))
    assert max_err < 5e-2, f"max abs error vs reference: {max_err}"

    print("KERNEL_OK")
</pallas_src>

<mosaic_0001>
module attributes {stable_mosaic.version = 11 : i64} {
  func.func @_sae_kernel(%arg0: i32, %arg1: memref<8x32xf32, #tpu.memory_space<vmem>>, %arg2: memref<32x256xbf16, #tpu.memory_space<vmem>>, %arg3: memref<256x128xbf16, #tpu.memory_space<vmem>>, %arg4: memref<128x128xbf16, #tpu.memory_space<vmem>>, %arg5: memref<128x128xbf16, #tpu.memory_space<vmem>>, %arg6: memref<128x128xbf16, #tpu.memory_space<vmem>>, %arg7: memref<128x128xbf16, #tpu.memory_space<vmem>>, %arg8: memref<128x256xbf16, #tpu.memory_space<vmem>>, %arg9: memref<256x32xbf16, #tpu.memory_space<vmem>>, %arg10: memref<8x256xf32, #tpu.memory_space<vmem>>, %arg11: memref<8x32xf32, #tpu.memory_space<vmem>>) attributes {dimension_semantics = [#tpu.dimension_semantics<parallel>], iteration_bounds = array<i64: 1>, scalar_prefetch = 0 : i64, scratch_operands = 0 : i64, tpu.core_type = #tpu.core_type<tc>, window_params = [{transform_indices = @transform_0, window_bounds = array<i64: 8, 32>}, {pipeline_mode = #tpu.pipeline_mode<synchronous>, transform_indices = @transform_1, window_bounds = array<i64: 32, 256>}, {pipeline_mode = #tpu.pipeline_mode<synchronous>, transform_indices = @transform_2, window_bounds = array<i64: 256, 128>}, {pipeline_mode = #tpu.pipeline_mode<synchronous>, transform_indices = @transform_3, window_bounds = array<i64: 128, 128>}, {pipeline_mode = #tpu.pipeline_mode<synchronous>, transform_indices = @transform_4, window_bounds = array<i64: 128, 128>}, {pipeline_mode = #tpu.pipeline_mode<synchronous>, transform_indices = @transform_5, window_bounds = array<i64: 128, 128>}, {pipeline_mode = #tpu.pipeline_mode<synchronous>, transform_indices = @transform_6, window_bounds = array<i64: 128, 128>}, {pipeline_mode = #tpu.pipeline_mode<synchronous>, transform_indices = @transform_7, window_bounds = array<i64: 128, 256>}, {pipeline_mode = #tpu.pipeline_mode<synchronous>, transform_indices = @transform_8, window_bounds = array<i64: 256, 32>}, {pipeline_mode = #tpu.pipeline_mode<synchronous>, transform_indices = @transform_9, window_bounds = array<i64: 8, 256>}, {transform_indices = @transform_10, window_bounds = array<i64: 8, 32>}]} {
    %c0 = arith.constant 0 : index
    %c0_0 = arith.constant 0 : index
    %0 = vector.load %arg1[%c0, %c0_0] : memref<8x32xf32, #tpu.memory_space<vmem>>, vector<8x32xf32>
    %1 = arith.truncf %0 : vector<8x32xf32> to vector<8x32xbf16>
    %c0_1 = arith.constant 0 : index
    %c0_2 = arith.constant 0 : index
    %2 = vector.load %arg2[%c0_1, %c0_2] : memref<32x256xbf16, #tpu.memory_space<vmem>>, vector<32x256xbf16>
    %cst = arith.constant dense<0.000000e+00> : vector<8x256xf32>
    %3 = tpu.matmul %1, %2, %cst {dimension_numbers = #tpu.dot_dimension_numbers<[1], [0], [0], [1], [0, 0, 1, 1], [], []>} : vector<8x32xbf16>, vector<32x256xbf16>, vector<8x256xf32> -> vector<8x256xf32>
    %c0_3 = arith.constant 0 : index
    %c0_4 = arith.constant 0 : index
    %4 = vector.load %arg10[%c0_3, %c0_4] : memref<8x256xf32, #tpu.memory_space<vmem>>, vector<1x256xf32>
    %5 = vector.broadcast %4 : vector<1x256xf32> to vector<8x256xf32>
    %6 = arith.addf %3, %5 : vector<8x256xf32>
    %7 = arith.truncf %6 : vector<8x256xf32> to vector<8x256xbf16>
    %cst_5 = arith.constant 1.000980e-02 : bf16
    %8 = vector.broadcast %cst_5 : bf16 to vector<8x256xbf16>
    %9 = arith.mulf %8, %7 : vector<8x256xbf16>
    %10 = arith.maximumf %7, %9 : vector<8x256xbf16>
    %c0_6 = arith.constant 0 : index
    %c0_7 = arith.constant 0 : index
    %11 = vector.load %arg3[%c0_6, %c0_7] : memref<256x128xbf16, #tpu.memory_space<vmem>>, vector<256x128xbf16>
    %cst_8 = arith.constant dense<0.000000e+00> : vector<8x128xf32>
    %12 = tpu.matmul %10, %11, %cst_8 {dimension_numbers = #tpu.dot_dimension_numbers<[1], [0], [0], [1], [0, 0, 1, 1], [], []>} : vector<8x256xbf16>, vector<256x128xbf16>, vector<8x128xf32> -> vector<8x128xf32>
    %c1 = arith.constant 1 : index
    %c0_9 = arith.constant 0 : index
    %13 = vector.load %arg10[%c1, %c0_9] : memref<8x256xf32, #tpu.memory_space<vmem>>, vector<1x128xf32>
    %14 = vector.broadcast %13 : vector<1x128xf32> to vector<8x128xf32>
    %15 = arith.addf %12, %14 : vector<8x128xf32>
    %16 = arith.truncf %15 : vector<8x128xf32> to vector<8x128xbf16>
    %cst_10 = arith.constant 1.000980e-02 : bf16
    %17 = vector.broadcast %cst_10 : bf16 to vector<8x128xbf16>
    %18 = arith.mulf %17, %16 : vector<8x128xbf16>
    %19 = arith.maximumf %16, %18 : vector<8x128xbf16>
    %c0_11 = arith.constant 0 : index
    %c0_12 = arith.constant 0 : index
    %20 = vector.load %arg4[%c0_11, %c0_12] : memref<128x128xbf16, #tpu.memory_space<vmem>>, vector<128x128xbf16>
    %cst_13 = arith.constant dense<0.000000e+00> : vector<8x128xf32>
    %21 = tpu.matmul %19, %20, %cst_13 {dimension_numbers = #tpu.dot_dimension_numbers<[1], [0], [0], [1], [0, 0, 1, 1], [], []>} : vector<8x128xbf16>, vector<128x128xbf16>, vector<8x128xf32> -> vector<8x128xf32>
    %c2 = arith.constant 2 : index
    %c0_14 = arith.constant 0 : index
    %22 = vector.load %arg10[%c2, %c0_14] : memref<8x256xf32, #tpu.memory_space<vmem>>, vector<1x128xf32>
    %23 = vector.broadcast %22 : vector<1x128xf32> to vector<8x128xf32>
    %24 = arith.addf %21, %23 : vector<8x128xf32>
    %25 = arith.truncf %24 : vector<8x128xf32> to vector<8x128xbf16>
    %cst_15 = arith.constant 1.000980e-02 : bf16
    %26 = vector.broadcast %cst_15 : bf16 to vector<8x128xbf16>
    %27 = arith.mulf %26, %25 : vector<8x128xbf16>
    %28 = arith.maximumf %25, %27 : vector<8x128xbf16>
    %c0_16 = arith.constant 0 : index
    %c0_17 = arith.constant 0 : index
    %29 = vector.load %arg5[%c0_16, %c0_17] : memref<128x128xbf16, #tpu.memory_space<vmem>>, vector<128x128xbf16>
    %cst_18 = arith.constant dense<0.000000e+00> : vector<8x128xf32>
    %30 = tpu.matmul %28, %29, %cst_18 {dimension_numbers = #tpu.dot_dimension_numbers<[1], [0], [0], [1], [0, 0, 1, 1], [], []>} : vector<8x128xbf16>, vector<128x128xbf16>, vector<8x128xf32> -> vector<8x128xf32>
    %c3 = arith.constant 3 : index
    %c0_19 = arith.constant 0 : index
    %31 = vector.load %arg10[%c3, %c0_19] : memref<8x256xf32, #tpu.memory_space<vmem>>, vector<1x128xf32>
    %32 = vector.broadcast %31 : vector<1x128xf32> to vector<8x128xf32>
    %33 = arith.addf %30, %32 : vector<8x128xf32>
    %34 = arith.truncf %33 : vector<8x128xf32> to vector<8x128xbf16>
    %cst_20 = arith.constant 1.000980e-02 : bf16
    %35 = vector.broadcast %cst_20 : bf16 to vector<8x128xbf16>
    %36 = arith.mulf %35, %34 : vector<8x128xbf16>
    %37 = arith.maximumf %34, %36 : vector<8x128xbf16>
    %c0_21 = arith.constant 0 : index
    %c0_22 = arith.constant 0 : index
    %38 = vector.load %arg6[%c0_21, %c0_22] : memref<128x128xbf16, #tpu.memory_space<vmem>>, vector<128x128xbf16>
    %cst_23 = arith.constant dense<0.000000e+00> : vector<8x128xf32>
    %39 = tpu.matmul %37, %38, %cst_23 {dimension_numbers = #tpu.dot_dimension_numbers<[1], [0], [0], [1], [0, 0, 1, 1], [], []>} : vector<8x128xbf16>, vector<128x128xbf16>, vector<8x128xf32> -> vector<8x128xf32>
    %c4 = arith.constant 4 : index
    %c0_24 = arith.constant 0 : index
    %40 = vector.load %arg10[%c4, %c0_24] : memref<8x256xf32, #tpu.memory_space<vmem>>, vector<1x128xf32>
    %41 = vector.broadcast %40 : vector<1x128xf32> to vector<8x128xf32>
    %42 = arith.addf %39, %41 : vector<8x128xf32>
    %43 = arith.truncf %42 : vector<8x128xf32> to vector<8x128xbf16>
    %cst_25 = arith.constant 1.000980e-02 : bf16
    %44 = vector.broadcast %cst_25 : bf16 to vector<8x128xbf16>
    %45 = arith.mulf %44, %43 : vector<8x128xbf16>
    %46 = arith.maximumf %43, %45 : vector<8x128xbf16>
    %c0_26 = arith.constant 0 : index
    %c0_27 = arith.constant 0 : index
    %47 = vector.load %arg7[%c0_26, %c0_27] : memref<128x128xbf16, #tpu.memory_space<vmem>>, vector<128x128xbf16>
    %cst_28 = arith.constant dense<0.000000e+00> : vector<8x128xf32>
    %48 = tpu.matmul %46, %47, %cst_28 {dimension_numbers = #tpu.dot_dimension_numbers<[1], [0], [0], [1], [0, 0, 1, 1], [], []>} : vector<8x128xbf16>, vector<128x128xbf16>, vector<8x128xf32> -> vector<8x128xf32>
    %c5 = arith.constant 5 : index
    %c0_29 = arith.constant 0 : index
    %49 = vector.load %arg10[%c5, %c0_29] : memref<8x256xf32, #tpu.memory_space<vmem>>, vector<1x128xf32>
    %50 = vector.broadcast %49 : vector<1x128xf32> to vector<8x128xf32>
    %51 = arith.addf %48, %50 : vector<8x128xf32>
    %52 = arith.truncf %51 : vector<8x128xf32> to vector<8x128xbf16>
    %cst_30 = arith.constant 1.000980e-02 : bf16
    %53 = vector.broadcast %cst_30 : bf16 to vector<8x128xbf16>
    %54 = arith.mulf %53, %52 : vector<8x128xbf16>
    %55 = arith.maximumf %52, %54 : vector<8x128xbf16>
    %c0_31 = arith.constant 0 : index
    %c0_32 = arith.constant 0 : index
    %56 = vector.load %arg8[%c0_31, %c0_32] : memref<128x256xbf16, #tpu.memory_space<vmem>>, vector<128x256xbf16>
    %cst_33 = arith.constant dense<0.000000e+00> : vector<8x256xf32>
    %57 = tpu.matmul %55, %56, %cst_33 {dimension_numbers = #tpu.dot_dimension_numbers<[1], [0], [0], [1], [0, 0, 1, 1], [], []>} : vector<8x128xbf16>, vector<128x256xbf16>, vector<8x256xf32> -> vector<8x256xf32>
    %c6 = arith.constant 6 : index
    %c0_34 = arith.constant 0 : index
    %58 = vector.load %arg10[%c6, %c0_34] : memref<8x256xf32, #tpu.memory_space<vmem>>, vector<1x256xf32>
    %59 = vector.broadcast %58 : vector<1x256xf32> to vector<8x256xf32>
    %60 = arith.addf %57, %59 : vector<8x256xf32>
    %61 = arith.truncf %60 : vector<8x256xf32> to vector<8x256xbf16>
    %cst_35 = arith.constant 1.000980e-02 : bf16
    %62 = vector.broadcast %cst_35 : bf16 to vector<8x256xbf16>
    %63 = arith.mulf %62, %61 : vector<8x256xbf16>
    %64 = arith.maximumf %61, %63 : vector<8x256xbf16>
    %c0_36 = arith.constant 0 : index
    %c0_37 = arith.constant 0 : index
    %65 = vector.load %arg9[%c0_36, %c0_37] : memref<256x32xbf16, #tpu.memory_space<vmem>>, vector<256x32xbf16>
    %cst_38 = arith.constant dense<0.000000e+00> : vector<8x32xf32>
    %66 = tpu.matmul %64, %65, %cst_38 {dimension_numbers = #tpu.dot_dimension_numbers<[1], [0], [0], [1], [0, 0, 1, 1], [], []>} : vector<8x256xbf16>, vector<256x32xbf16>, vector<8x32xf32> -> vector<8x32xf32>
    %c7 = arith.constant 7 : index
    %c0_39 = arith.constant 0 : index
    %67 = vector.load %arg10[%c7, %c0_39] : memref<8x256xf32, #tpu.memory_space<vmem>>, vector<1x32xf32>
    %68 = vector.broadcast %67 : vector<1x32xf32> to vector<8x32xf32>
    %69 = arith.addf %66, %68 : vector<8x32xf32>
    %cst_40 = arith.constant 0.000000e+00 : f32
    %70 = vector.broadcast %cst_40 : f32 to vector<8x32xf32>
    %71 = arith.maximumf %69, %70 : vector<8x32xf32>
    %c0_41 = arith.constant 0 : index
    %c0_42 = arith.constant 0 : index
    %72 = vector.load %arg11[%c0_41, %c0_42] : memref<8x32xf32, #tpu.memory_space<vmem>>, vector<8x32xf32>
    tpu.vector_store %arg11[%c0_41, %c0_42], %71 {strides = array<i32>} : memref<8x32xf32, #tpu.memory_space<vmem>>, vector<8x32xf32>,
    return
  }
  func.func @transform_0(%arg0: i32) -> (i32, i32) {
    %c0_i32 = arith.constant 0 : i32
    %c0_i32_0 = arith.constant 0 : i32
    return %arg0, %c0_i32 : i32, i32
  }
  func.func @transform_1(%arg0: i32) -> (i32, i32) {
    %c0_i32 = arith.constant 0 : i32
    %c0_i32_0 = arith.constant 0 : i32
    %c0_i32_1 = arith.constant 0 : i32
    return %c0_i32, %c0_i32_0 : i32, i32
  }
  func.func @transform_2(%arg0: i32) -> (i32, i32) {
    %c0_i32 = arith.constant 0 : i32
    %c0_i32_0 = arith.constant 0 : i32
    %c0_i32_1 = arith.constant 0 : i32
    return %c0_i32, %c0_i32_0 : i32, i32
  }
  func.func @transform_3(%arg0: i32) -> (i32, i32) {
    %c0_i32 = arith.constant 0 : i32
    %c0_i32_0 = arith.constant 0 : i32
    %c0_i32_1 = arith.constant 0 : i32
    return %c0_i32, %c0_i32_0 : i32, i32
  }
  func.func @transform_4(%arg0: i32) -> (i32, i32) {
    %c0_i32 = arith.constant 0 : i32
    %c0_i32_0 = arith.constant 0 : i32
    %c0_i32_1 = arith.constant 0 : i32
    return %c0_i32, %c0_i32_0 : i32, i32
  }
  func.func @transform_5(%arg0: i32) -> (i32, i32) {
    %c0_i32 = arith.constant 0 : i32
    %c0_i32_0 = arith.constant 0 : i32
    %c0_i32_1 = arith.constant 0 : i32
    return %c0_i32, %c0_i32_0 : i32, i32
  }
  func.func @transform_6(%arg0: i32) -> (i32, i32) {
    %c0_i32 = arith.constant 0 : i32
    %c0_i32_0 = arith.constant 0 : i32
    %c0_i32_1 = arith.constant 0 : i32
    return %c0_i32, %c0_i32_0 : i32, i32
  }
  func.func @transform_7(%arg0: i32) -> (i32, i32) {
    %c0_i32 = arith.constant 0 : i32
    %c0_i32_0 = arith.constant 0 : i32
    %c0_i32_1 = arith.constant 0 : i32
    return %c0_i32, %c0_i32_0 : i32, i32
  }
  func.func @transform_8(%arg0: i32) -> (i32, i32) {
    %c0_i32 = arith.constant 0 : i32
    %c0_i32_0 = arith.constant 0 : i32
    %c0_i32_1 = arith.constant 0 : i32
    return %c0_i32, %c0_i32_0 : i32, i32
  }
  func.func @transform_9(%arg0: i32) -> (i32, i32) {
    %c0_i32 = arith.constant 0 : i32
    %c0_i32_0 = arith.constant 0 : i32
    %c0_i32_1 = arith.constant 0 : i32
    return %c0_i32, %c0_i32_0 : i32, i32
  }
  func.func @transform_10(%arg0: i32) -> (i32, i32) {
    %c0_i32 = arith.constant 0 : i32
    %c0_i32_0 = arith.constant 0 : i32
    return %arg0, %c0_i32 : i32, i32
  }
}

</mosaic_0001>

<llo_original>
// kernel: sae_forward.1
$region0: #{sae_forward.1}
  #allocation0 [shape = 'u32[]', space=smem, size = 0x4, offset = 0x4, fixed_abs, tag = 'smem constant byte address 0x4 - core index']
  #allocation1 [shape = 'u32[144,128]{1,0:T(1,128)}', space=vmem, size = 0x12000, scoped, tag = 'internal scratch']
  %s0 = inlined_call_operand.hbm [shape: f32[8,32], index: 0, kind: input, shape index: {}]
  %s1 = inlined_call_operand.vmem [shape: bf16[32,256], index: 1, kind: input, shape index: {}]
  %s2 = inlined_call_operand.vmem [shape: bf16[256,128], index: 2, kind: input, shape index: {}]
  %s3 = inlined_call_operand.hbm [shape: bf16[128,128], index: 3, kind: input, shape index: {}]
  %s4 = inlined_call_operand.hbm [shape: bf16[128,128], index: 4, kind: input, shape index: {}]
  %s5 = inlined_call_operand.hbm [shape: bf16[128,128], index: 5, kind: input, shape index: {}]
  %s6 = inlined_call_operand.hbm [shape: bf16[128,128], index: 6, kind: input, shape index: {}]
  %s7 = inlined_call_operand.hbm [shape: bf16[128,256], index: 7, kind: input, shape index: {}]
  %s8 = inlined_call_operand.vmem [shape: bf16[256,32], index: 8, kind: input, shape index: {}]
  %s9 = inlined_call_operand.vmem [shape: f32[8,256], index: 9, kind: input, shape index: {}]
  %s10 = inlined_call_operand.hbm [shape: f32[8,32], index: 10, kind: output, shape index: {}]
  %s11 = sld [smem:[#allocation0]]
  $region74: #{sae_forward.1} parent=0
    _
  %s13 = ssub.s32 1, %s11
  %s14 = scalar_select 0, %s13, %s11
  $region1: #{sae_forward.1} parent=0
    #allocation2 [shape = 'u8[4096]{0}', space=vmem, size = 0x1000, scoped, tag = 'input window, operand 0, single buffered']
    #allocation3 [shape = 's32[1]{0}', space=sflag, size = 0x4, scoped, tag = 'scoped memory for sae_forward.1']
    #allocation4 [shape = 's32[1]{0}', space=sflag, size = 0x4, scoped, tag = 'scoped memory for sae_forward.1']
    #allocation5 [shape = 'u8[32768]{0}', space=vmem, size = 0x8000, scoped, tag = 'input window, operand 3, single buffered']
    #allocation6 [shape = 's32[1]{0}', space=sflag, size = 0x4, scoped, tag = 'scoped memory for sae_forward.1']
    #allocation7 [shape = 'u8[32768]{0}', space=vmem, size = 0x8000, scoped, tag = 'input window, operand 4, single buffered']
    #allocation8 [shape = 'u8[32768]{0}', space=vmem, size = 0x8000, scoped, tag = 'input window, operand 5, single buffered']
    #allocation9 [shape = 's32[1]{0}', space=sflag, size = 0x4, scoped, tag = 'scoped memory for sae_forward.1']
    #allocation10 [shape = 'u8[32768]{0}', space=vmem, size = 0x8000, scoped, tag = 'input window, operand 6, single buffered']
    #allocation11 [shape = 'u8[65536]{0}', space=vmem, size = 0x10000, scoped, tag = 'input window, operand 7, single buffered']
    #allocation12 [shape = 's32[1]{0}', space=sflag, size = 0x4, scoped, tag = 'scoped memory for sae_forward.1']
    #allocation13 [shape = 'u8[4096]{0}', space=vmem, size = 0x1000, scoped, tag = 'output window, operand 0, single buffered']
    %15 = vsyncpa [#allocation3], 0
    %16 = vsyncpa [#allocation6], 0
    %17 = vsyncpa [#allocation9], 0
    %18 = vsyncpa [#allocation12], 0
    %19 = vsyncpa [#allocation4], 0
    // Predicated region
    $region2: #{sae_forward.1} parent=1 // pred_check
      _
    $region3: #{sae_forward.1} parent=1 // pred_check_branch
      %21 = sbr.rel (0) target = $region5
    $region4: #{sae_forward.1} parent=1 // pred_region
      %s23 = ssub.s32 128, 128
      %24 = vsyncadd [#allocation3], %s23
      %s26 = sshll.u32 [#allocation2], 4
      %s27 = int_to_ptr.vmem [resolvable:$true] %s26
      %29 = dma.hbm_to_vmem [thread:$0]  %s0, 128, %s27, [#allocation3]
    $region5: #{sae_forward.1} parent=1 // pred_fallthru
      _
    // Predicated region
    $region6: #{sae_forward.1} parent=1 // pred_check
      _
    $region7: #{sae_forward.1} parent=1 // pred_check_branch
      %31 = sbr.rel (0) target = $region9
    $region8: #{sae_forward.1} parent=1 // pred_region
      _
    $region9: #{sae_forward.1} parent=1 // pred_fallthru
      _
    // Predicated region
    $region10: #{sae_forward.1} parent=1 // pred_check
      _
    $region11: #{sae_forward.1} parent=1 // pred_check_branch
      %33 = sbr.rel (0) target = $region13
    $region12: #{sae_forward.1} parent=1 // pred_region
      _
    $region13: #{sae_forward.1} parent=1 // pred_fallthru
      _
    // Predicated region
    $region14: #{sae_forward.1} parent=1 // pred_check
      _
    $region15: #{sae_forward.1} parent=1 // pred_check_branch
      %35 = sbr.rel (0) target = $region17
    $region16: #{sae_forward.1} parent=1 // pred_region
      %s37 = ssub.s32 1024, 1024
      %38 = vsyncadd [#allocation6], %s37
      %s39 = sshll.u32 [#allocation5], 4
      %s40 = int_to_ptr.vmem [resolvable:$true] %s39
      %45 = dma.hbm_to_vmem [thread:$0]  %s3, 1024, %s40, [#allocation6], 64, 64, 4
    $region17: #{sae_forward.1} parent=1 // pred_fallthru
      _
    // Predicated region
    $region18: #{sae_forward.1} parent=1 // pred_check
      _
    $region19: #{sae_forward.1} parent=1 // pred_check_branch
      %47 = sbr.rel (0) target = $region21
    $region20: #{sae_forward.1} parent=1 // pred_region
      %s49 = ssub.s32 1024, 1024
      %50 = vsyncadd [#allocation6], %s49
      %s51 = sshll.u32 [#allocation7], 4
      %s52 = int_to_ptr.vmem [resolvable:$true] %s51
      %57 = dma.hbm_to_vmem [thread:$0]  %s4, 1024, %s52, [#allocation6], 64, 64, 4
    $region21: #{sae_forward.1} parent=1 // pred_fallthru
      _
    // Predicated region
    $region22: #{sae_forward.1} parent=1 // pred_check
      _
    $region23: #{sae_forward.1} parent=1 // pred_check_branch
      %59 = sbr.rel (0) target = $region25
    $region24: #{sae_forward.1} parent=1 // pred_region
      %s61 = ssub.s32 1024, 1024
      %62 = vsyncadd [#allocation9], %s61
      %s63 = sshll.u32 [#allocation8], 4
      %s64 = int_to_ptr.vmem [resolvable:$true] %s63
      %69 = dma.hbm_to_vmem [thread:$0]  %s5, 1024, %s64, [#allocation9], 64, 64, 4
    $region25: #{sae_forward.1} parent=1 // pred_fallthru
      _
    // Predicated region
    $region26: #{sae_forward.1} parent=1 // pred_check
      _
    $region27: #{sae_forward.1} parent=1 // pred_check_branch
      %71 = sbr.rel (0) target = $region29
    $region28: #{sae_forward.1} parent=1 // pred_region
      %s73 = ssub.s32 1024, 1024
      %74 = vsyncadd [#allocation9], %s73
      %s75 = sshll.u32 [#allocation10], 4
      %s76 = int_to_ptr.vmem [resolvable:$true] %s75
      %81 = dma.hbm_to_vmem [thread:$0]  %s6, 1024, %s76, [#allocation9], 64, 64, 4
    $region29: #{sae_forward.1} parent=1 // pred_fallthru
      _
    // Predicated region
    $region30: #{sae_forward.1} parent=1 // pred_check
      _
    $region31: #{sae_forward.1} parent=1 // pred_check_branch
      %83 = sbr.rel (0) target = $region33
    $region32: #{sae_forward.1} parent=1 // pred_region
      %s85 = ssub.s32 2048, 2048
      %86 = vsyncadd [#allocation12], %s85
      %s87 = sshll.u32 [#allocation11], 4
      %s88 = int_to_ptr.vmem [resolvable:$true] %s87
      %93 = dma.hbm_to_vmem [thread:$0]  %s7, 2048, %s88, [#allocation12], 128, 128, 8
    $region33: #{sae_forward.1} parent=1 // pred_fallthru
      _
    // Predicated region
    $region34: #{sae_forward.1} parent=1 // pred_check
      _
    $region35: #{sae_forward.1} parent=1 // pred_check_branch
      %95 = sbr.rel (0) target = $region37
    $region36: #{sae_forward.1} parent=1 // pred_region
      _
    $region37: #{sae_forward.1} parent=1 // pred_fallthru
      _
    // Predicated region
    $region38: #{sae_forward.1} parent=1 // pred_check
      _
    $region39: #{sae_forward.1} parent=1 // pred_check_branch
      %97 = sbr.rel (0) target = $region41
    $region40: #{sae_forward.1} parent=1 // pred_region
      _
    $region41: #{sae_forward.1} parent=1 // pred_fallthru
      _
    // Predicated region
    $region42: #{sae_forward.1} parent=1 // pred_check
      _
    $region43: #{sae_forward.1} parent=1 // pred_check_branch
      %99 = sbr.rel (0) target = $region45
    $region44: #{sae_forward.1} parent=1 // pred_region
      %100 = dma.done [#allocation3], 128
    $region45: #{sae_forward.1} parent=1 // pred_fallthru
      _
    // Predicated region
    $region46: #{sae_forward.1} parent=1 // pred_check
      _
    $region47: #{sae_forward.1} parent=1 // pred_check_branch
      %102 = sbr.rel (0) target = $region49
    $region48: #{sae_forward.1} parent=1 // pred_region
      %103 = dma.done [#allocation6], 1024
    $region49: #{sae_forward.1} parent=1 // pred_fallthru
      _
    // Predicated region
    $region50: #{sae_forward.1} parent=1 // pred_check
      _
    $region51: #{sae_forward.1} parent=1 // pred_check_branch
      %105 = sbr.rel (0) target = $region53
    $region52: #{sae_forward.1} parent=1 // pred_region
      %106 = dma.done [#allocation6], 1024
    $region53: #{sae_forward.1} parent=1 // pred_fallthru
      _
    // Predicated region
    $region54: #{sae_forward.1} parent=1 // pred_check
      _
    $region55: #{sae_forward.1} parent=1 // pred_check_branch
      %108 = sbr.rel (0) target = $region57
    $region56: #{sae_forward.1} parent=1 // pred_region
      %109 = dma.done [#allocation9], 1024
    $region57: #{sae_forward.1} parent=1 // pred_fallthru
      _
    // Predicated region
    $region58: #{sae_forward.1} parent=1 // pred_check
      _
    $region59: #{sae_forward.1} parent=1 // pred_check_branch
      %111 = sbr.rel (0) target = $region61
    $region60: #{sae_forward.1} parent=1 // pred_region
      %112 = dma.done [#allocation9], 1024
    $region61: #{sae_forward.1} parent=1 // pred_fallthru
      _
    // Predicated region
    $region62: #{sae_forward.1} parent=1 // pred_check
      _
    $region63: #{sae_forward.1} parent=1 // pred_check_branch
      %114 = sbr.rel (0) target = $region65
    $region64: #{sae_forward.1} parent=1 // pred_region
      %115 = dma.done [#allocation12], 2048
    $region65: #{sae_forward.1} parent=1 // pred_fallthru
      _
    %v118 = vld [vmem:[#allocation2] sm:$0xff]
    %v119 = vpack.c.bf16 %v118, %v118
    %v120 = vld [vmem:[%s1] sm:$0xff]
    %v121 = vld [vmem:[%s1 + $0x8] sm:$0xff]
    %v122 = vld [vmem:[%s1 + $0x10] sm:$0xff]
    %v123 = vld [vmem:[%s1 + $0x18] sm:$0xff]
    %v124 = vld [vmem:[%s9] ss:$8 sm:$0x3]
    %v126 = vlaneseq
    %v127 = vshrl.u32 %v126, 7
    %v128 = vsub.s32 0, %v127
    %v129 = vrot.slane %v124, %v128
    %v130 = vlaneseq
    %v131 = vshrl.u32 %v130, 7
    %v132 = vsub.s32 1, %v131
    %v133 = vrot.slane %v124, %v132
    %v140 = vunpack.c.l.b16 %v120
    %v141 = vunpack.c.h.b16 %v120
    %v142 = vunpack.c.l.b16 %v121
    %v143 = vunpack.c.h.b16 %v121
    %v144 = vunpack.c.l.b16 %v122
    %v145 = vunpack.c.h.b16 %v122
    %v146 = vunpack.c.l.b16 %v123
    %v147 = vunpack.c.h.b16 %v123
    %v148 = vpack.c.b16 %v142, %v140
    %v149 = vpack.c.b16 %v143, %v141
    %v150 = vpack.c.b16 %v146, %v144
    %v151 = vpack.c.b16 %v147, %v145
    %vm156 = vcmask 261120
    %v158 = vsel %vm156, %v119, 0
    %160 = vmatprep.subr.bf16.mxu0 %v149
    %161 = vmatpush1.bf16.msra.mxu0 %v148
    %162 = vmatprep.subr.bf16.mxu0 %v151
    %163 = vmatpush1.bf16.msra.mxu0 %v150
    %164 = vmatprep.subr.bf16.mxu0 0
    %165 = vmatpush1.bf16.msra.mxu0 0
    %166 = vmatprep.subr.bf16.mxu0 0
    %167 = vmatpush1.bf16.msra.mxu0 0
    %168 = vmatprep.subr.bf16.mxu0 0
    %169 = vmatpush1.bf16.msra.mxu0 0
    %170 = vmatprep.subr.bf16.mxu0 0
    %171 = vmatpush1.bf16.msra.mxu0 0
    %172 = vmatprep.subr.bf16.mxu0 0
    %173 = vmatpush1.bf16.msra.mxu0 0
    %174 = vmatprep.subr.bf16.mxu0 0
    %175 = vmatpush1.bf16.msra.mxu0 0
    %176 = vmatprep.subr.bf16.mxu0 0
    %177 = vmatpush1.bf16.msra.mxu0 0
    %178 = vmatprep.subr.bf16.mxu0 0
    %179 = vmatpush1.bf16.msra.mxu0 0
    %180 = vmatprep.subr.bf16.mxu0 0
    %181 = vmatpush1.bf16.msra.mxu0 0
    %182 = vmatprep.subr.bf16.mxu0 0
    %183 = vmatpush1.bf16.msra.mxu0 0
    %184 = vmatprep.subr.bf16.mxu0 0
    %185 = vmatpush1.bf16.msra.mxu0 0
    %186 = vmatprep.subr.bf16.mxu0 0
    %187 = vmatpush1.bf16.msra.mxu0 0
    %188 = vmatprep.subr.bf16.mxu0 0
    %189 = vmatpush1.bf16.msra.mxu0 0
    %190 = vmatprep.subr.bf16.mxu0 0
    %191 = vmatpush1.bf16.msra.mxu0 0
    %192 = vmatprep.mubr.bf16.mxu0 0
    %193 = vmatmul.mubr.bf16.gmra.mrb[0].mxu0 %v158
    %v194 = vpop.f32.mrb[0].mxu0
    %v195 = vadd.f32 %v129, %v194
    %v196 = vpop.f32.mrb[0].mxu0
    %v197 = vadd.f32 %v133, %v196
    %v198 = vpop.f32.mrb[0].mxu0
    %v199 = vpop.f32.mrb[0].mxu0
    %200 = vdwg.mxu0
    %v201 = vpack.c.bf16 %v195, %v195
    %v202 = vpack.c.bf16 %v197, %v197
    %v203 = vmul.bf16 %v201, 1009007652
    %v204 = vmul.bf16 %v202, 1009007652
    %v205 = vmax.bf16 %v201, %v203
    %v206 = vmax.bf16 %v202, %v204
    %v207 = vld [vmem:[%s2] sm:$0xf]
    %v208 = vld [vmem:[%s2 + $0x4] sm:$0xf]
    %v209 = vld [vmem:[%s2 + $0x8] sm:$0xf]
    %v210 = vld [vmem:[%s2 + $0xc] sm:$0xf]
    %v211 = vld [vmem:[%s2 + $0x10] sm:$0xf]
    %v212 = vld [vmem:[%s2 + $0x14] sm:$0xf]
    %v213 = vld [vmem:[%s2 + $0x18] sm:$0xf]
    %v214 = vld [vmem:[%s2 + $0x1c] sm:$0xf]
    %v215 = vld [vmem:[%s2 + $0x20] sm:$0xf]
    %v216 = vld [vmem:[%s2 + $0x24] sm:$0xf]
    %v217 = vld [vmem:[%s2 + $0x28] sm:$0xf]
    %v218 = vld [vmem:[%s2 + $0x2c] sm:$0xf]
    %v219 = vld [vmem:[%s2 + $0x30] sm:$0xf]
    %v220 = vld [vmem:[%s2 + $0x34] sm:$0xf]
    %v221 = vld [vmem:[%s2 + $0x38] sm:$0xf]
    %v222 = vld [vmem:[%s2 + $0x3c] sm:$0xf]
    %v223 = vld [vmem:[%s2 + $0x40] sm:$0xf]
    %v224 = vld [vmem:[%s2 + $0x44] sm:$0xf]
    %v225 = vld [vmem:[%s2 + $0x48] sm:$0xf]
    %v226 = vld [vmem:[%s2 + $0x4c] sm:$0xf]
    %v227 = vld [vmem:[%s2 + $0x50] sm:$0xf]
    %v228 = vld [vmem:[%s2 + $0x54] sm:$0xf]
    %v229 = vld [vmem:[%s2 + $0x58] sm:$0xf]
    %v230 = vld [vmem:[%s2 + $0x5c] sm:$0xf]
    %v231 = vld [vmem:[%s2 + $0x60] sm:$0xf]
    %v232 = vld [vmem:[%s2 + $0x64] sm:$0xf]
    %v233 = vld [vmem:[%s2 + $0x68] sm:$0xf]
    %v234 = vld [vmem:[%s2 + $0x6c] sm:$0xf]
    %v235 = vld [vmem:[%s2 + $0x70] sm:$0xf]
    %v236 = vld [vmem:[%s2 + $0x74] sm:$0xf]
    %v237 = vld [vmem:[%s2 + $0x78] sm:$0xf]
    %v238 = vld [vmem:[%s2 + $0x7c] sm:$0xf]
    %v239 = vld [vmem:[%s9 + $0x1] ss:$0 sm:$0xff]
    %v272 = vunpack.c.l.b16 %v207
    %v273 = vunpack.c.l.b16 %v208
    %v274 = vunpack.c.l.b16 %v209
    %v275 = vunpack.c.l.b16 %v210
    %v276 = vunpack.c.l.b16 %v211
    %v277 = vunpack.c.l.b16 %v212
    %v278 = vunpack.c.l.b16 %v213
    %v279 = vunpack.c.l.b16 %v214
    %v280 = vunpack.c.l.b16 %v215
    %v281 = vunpack.c.l.b16 %v216
    %v282 = vunpack.c.l.b16 %v217
    %v283 = vunpack.c.l.b16 %v218
    %v284 = vunpack.c.l.b16 %v219
    %v285 = vunpack.c.l.b16 %v220
    %v286 = vunpack.c.l.b16 %v221
    %v287 = vunpack.c.l.b16 %v222
    %v288 = vunpack.c.l.b16 %v223
    %v289 = vunpack.c.l.b16 %v224
    %v290 = vunpack.c.l.b16 %v225
    %v291 = vunpack.c.l.b16 %v226
    %v292 = vunpack.c.l.b16 %v227
    %v293 = vunpack.c.l.b16 %v228
    %v294 = vunpack.c.l.b16 %v229
    %v295 = vunpack.c.l.b16 %v230
    %v296 = vunpack.c.l.b16 %v231
    %v297 = vunpack.c.l.b16 %v232
    %v298 = vunpack.c.l.b16 %v233
    %v299 = vunpack.c.l.b16 %v234
    %v300 = vunpack.c.l.b16 %v235
    %v301 = vunpack.c.l.b16 %v236
    %v302 = vunpack.c.l.b16 %v237
    %v303 = vunpack.c.l.b16 %v238
    %v304 = vpack.c.b16 %v273, %v272
    %v305 = vpack.c.b16 %v275, %v274
    %v306 = vpack.c.b16 %v277, %v276
    %v307 = vpack.c.b16 %v279, %v278
    %v308 = vpack.c.b16 %v281, %v280
    %v309 = vpack.c.b16 %v283, %v282
    %v310 = vpack.c.b16 %v285, %v284
    %v311 = vpack.c.b16 %v287, %v286
    %v312 = vpack.c.b16 %v289, %v288
    %v313 = vpack.c.b16 %v291, %v290
    %v314 = vpack.c.b16 %v293, %v292
    %v315 = vpack.c.b16 %v295, %v294
    %v316 = vpack.c.b16 %v297, %v296
    %v317 = vpack.c.b16 %v299, %v298
    %v318 = vpack.c.b16 %v301, %v300
    %v319 = vpack.c.b16 %v303, %v302
    %336 = vmatprep.subr.bf16.mxu0 0
    %337 = vmatpush1.bf16.msra.mxu0 %v304
    %338 = vmatprep.subr.bf16.mxu0 0
    %339 = vmatpush1.bf16.msra.mxu0 %v305
    %340 = vmatprep.subr.bf16.mxu0 0
    %341 = vmatpush1.bf16.msra.mxu0 %v306
    %342 = vmatprep.subr.bf16.mxu0 0
    %343 = vmatpush1.bf16.msra.mxu0 %v307
    %344 = vmatprep.subr.bf16.mxu0 0
    %345 = vmatpush1.bf16.msra.mxu0 %v308
    %346 = vmatprep.subr.bf16.mxu0 0
    %347 = vmatpush1.bf16.msra.mxu0 %v309
    %348 = vmatprep.subr.bf16.mxu0 0
    %349 = vmatpush1.bf16.msra.mxu0 %v310
    %350 = vmatprep.subr.bf16.mxu0 0
    %351 = vmatpush1.bf16.msra.mxu0 %v311
    %352 = vmatprep.subr.bf16.mxu0 0
    %353 = vmatpush1.bf16.msra.mxu0 %v312
    %354 = vmatprep.subr.bf16.mxu0 0
    %355 = vmatpush1.bf16.msra.mxu0 %v313
    %356 = vmatprep.subr.bf16.mxu0 0
    %357 = vmatpush1.bf16.msra.mxu0 %v314
    %358 = vmatprep.subr.bf16.mxu0 0
    %359 = vmatpush1.bf16.msra.mxu0 %v315
    %360 = vmatprep.subr.bf16.mxu0 0
    %361 = vmatpush1.bf16.msra.mxu0 %v316
    %362 = vmatprep.subr.bf16.mxu0 0
    %363 = vmatpush1.bf16.msra.mxu0 %v317
    %364 = vmatprep.subr.bf16.mxu0 0
    %365 = vmatpush1.bf16.msra.mxu0 %v318
    %366 = vmatprep.subr.bf16.mxu0 0
    %367 = vmatpush1.bf16.msra.mxu0 %v319
    %368 = vmatprep.mubr.bf16.mxu0 %v206
    %369 = vmatmul.mubr.bf16.gmra.mrb[0].mxu0 %v205
    %v370 = vpop.f32.mrb[0].mxu0
    %v371 = vadd.f32 %v239, %v370
    %v372 = vpop.f32.mrb[0].mxu0
    %v373 = vpop.f32.mrb[0].mxu0
    %v374 = vpop.f32.mrb[0].mxu0
    %375 = vdwg.mxu0
    %v376 = vpack.c.bf16 %v371, %v371
    %v377 = vmul.bf16 %v376, 1009007652
    %v378 = vmax.bf16 %v376, %v377
    %v379 = vld [vmem:[#allocation5] sm:$0xf]
    %v380 = vld [vmem:[#allocation5 + $0x4] sm:$0xf]
    %v381 = vld [vmem:[#allocation5 + $0x8] sm:$0xf]
    %v382 = vld [vmem:[#allocation5 + $0xc] sm:$0xf]
    %v383 = vld [vmem:[#allocation5 + $0x10] sm:$0xf]
    %v384 = vld [vmem:[#allocation5 + $0x14] sm:$0xf]
    %v385 = vld [vmem:[#allocation5 + $0x18] sm:$0xf]
    %v386 = vld [vmem:[#allocation5 + $0x1c] sm:$0xf]
    %v387 = vld [vmem:[#allocation5 + $0x20] sm:$0xf]
    %v388 = vld [vmem:[#allocation5 + $0x24] sm:$0xf]
    %v389 = vld [vmem:[#allocation5 + $0x28] sm:$0xf]
    %v390 = vld [vmem:[#allocation5 + $0x2c] sm:$0xf]
    %v391 = vld [vmem:[#allocation5 + $0x30] sm:$0xf]
    %v392 = vld [vmem:[#allocation5 + $0x34] sm:$0xf]
    %v393 = vld [vmem:[#allocation5 + $0x38] sm:$0xf]
    %v394 = vld [vmem:[#allocation5 + $0x3c] sm:$0xf]
    %v395 = vld [vmem:[%s9 + $0x2] ss:$0 sm:$0xff]
    %v412 = vunpack.c.l.b16 %v379
    %v413 = vunpack.c.l.b16 %v380
    %v414 = vunpack.c.l.b16 %v381
    %v415 = vunpack.c.l.b16 %v382
    %v416 = vunpack.c.l.b16 %v383
    %v417 = vunpack.c.l.b16 %v384
    %v418 = vunpack.c.l.b16 %v385
    %v419 = vunpack.c.l.b16 %v386
    %v420 = vunpack.c.l.b16 %v387
    %v421 = vunpack.c.l.b16 %v388
    %v422 = vunpack.c.l.b16 %v389
    %v423 = vunpack.c.l.b16 %v390
    %v424 = vunpack.c.l.b16 %v391
    %v425 = vunpack.c.l.b16 %v392
    %v426 = vunpack.c.l.b16 %v393
    %v427 = vunpack.c.l.b16 %v394
    %v428 = vpack.c.b16 %v413, %v412
    %v429 = vpack.c.b16 %v415, %v414
    %v430 = vpack.c.b16 %v417, %v416
    %v431 = vpack.c.b16 %v419, %v418
    %v432 = vpack.c.b16 %v421, %v420
    %v433 = vpack.c.b16 %v423, %v422
    %v434 = vpack.c.b16 %v425, %v424
    %v435 = vpack.c.b16 %v427, %v426
    %444 = vmatprep.subr.bf16.mxu0 0
    %445 = vmatpush1.bf16.msra.mxu0 %v428
    %446 = vmatprep.subr.bf16.mxu0 0
    %447 = vmatpush1.bf16.msra.mxu0 %v429
    %448 = vmatprep.subr.bf16.mxu0 0
    %449 = vmatpush1.bf16.msra.mxu0 %v430
    %450 = vmatprep.subr.bf16.mxu0 0
    %451 = vmatpush1.bf16.msra.mxu0 %v431
    %452 = vmatprep.subr.bf16.mxu0 0
    %453 = vmatpush1.bf16.msra.mxu0 %v432
    %454 = vmatprep.subr.bf16.mxu0 0
    %455 = vmatpush1.bf16.msra.mxu0 %v433
    %456 = vmatprep.subr.bf16.mxu0 0
    %457 = vmatpush1.bf16.msra.mxu0 %v434
    %458 = vmatprep.subr.bf16.mxu0 0
    %459 = vmatpush1.bf16.msra.mxu0 %v435
    %460 = vmatprep.subr.bf16.mxu0 0
    %461 = vmatpush1.bf16.msra.mxu0 0
    %462 = vmatprep.subr.bf16.mxu0 0
    %463 = vmatpush1.bf16.msra.mxu0 0
    %464 = vmatprep.subr.bf16.mxu0 0
    %465 = vmatpush1.bf16.msra.mxu0 0
    %466 = vmatprep.subr.bf16.mxu0 0
    %467 = vmatpush1.bf16.msra.mxu0 0
    %468 = vmatprep.subr.bf16.mxu0 0
    %469 = vmatpush1.bf16.msra.mxu0 0
    %470 = vmatprep.subr.bf16.mxu0 0
    %471 = vmatpush1.bf16.msra.mxu0 0
    %472 = vmatprep.subr.bf16.mxu0 0
    %473 = vmatpush1.bf16.msra.mxu0 0
    %474 = vmatprep.subr.bf16.mxu0 0
    %475 = vmatpush1.bf16.msra.mxu0 0
    %476 = vmatprep.mubr.bf16.mxu0 0
    %477 = vmatmul.mubr.bf16.gmra.mrb[0].mxu0 %v378
    %v478 = vpop.f32.mrb[0].mxu0
    %v479 = vadd.f32 %v395, %v478
    %v480 = vpop.f32.mrb[0].mxu0
    %v481 = vpop.f32.mrb[0].mxu0
    %v482 = vpop.f32.mrb[0].mxu0
    %483 = vdwg.mxu0
    %v484 = vpack.c.bf16 %v479, %v479
    %v485 = vmul.bf16 %v484, 1009007652
    %v486 = vmax.bf16 %v484, %v485
    %v487 = vld [vmem:[#allocation7] sm:$0xf]
    %v488 = vld [vmem:[#allocation7 + $0x4] sm:$0xf]
    %v489 = vld [vmem:[#allocation7 + $0x8] sm:$0xf]
    %v490 = vld [vmem:[#allocation7 + $0xc] sm:$0xf]
    %v491 = vld [vmem:[#allocation7 + $0x10] sm:$0xf]
    %v492 = vld [vmem:[#allocation7 + $0x14] sm:$0xf]
    %v493 = vld [vmem:[#allocation7 + $0x18] sm:$0xf]
    %v494 = vld [vmem:[#allocation7 + $0x1c] sm:$0xf]
    %v495 = vld [vmem:[#allocation7 + $0x20] sm:$0xf]
    %v496 = vld [vmem:[#allocation7 + $0x24] sm:$0xf]
    %v497 = vld [vmem:[#allocation7 + $0x28] sm:$0xf]
    %v498 = vld [vmem:[#allocation7 + $0x2c] sm:$0xf]
    %v499 = vld [vmem:[#allocation7 + $0x30] sm:$0xf]
    %v500 = vld [vmem:[#allocation7 + $0x34] sm:$0xf]
    %v501 = vld [vmem:[#allocation7 + $0x38] sm:$0xf]
    %v502 = vld [vmem:[#allocation7 + $0x3c] sm:$0xf]
    %v503 = vld [vmem:[%s9 + $0x3] ss:$0 sm:$0xff]
    %v520 = vunpack.c.l.b16 %v487
    %v521 = vunpack.c.l.b16 %v488
    %v522 = vunpack.c.l.b16 %v489
    %v523 = vunpack.c.l.b16 %v490
    %v524 = vunpack.c.l.b16 %v491
    %v525 = vunpack.c.l.b16 %v492
    %v526 = vunpack.c.l.b16 %v493
    %v527 = vunpack.c.l.b16 %v494
    %v528 = vunpack.c.l.b16 %v495
    %v529 = vunpack.c.l.b16 %v496
    %v530 = vunpack.c.l.b16 %v497
    %v531 = vunpack.c.l.b16 %v498
    %v532 = vunpack.c.l.b16 %v499
    %v533 = vunpack.c.l.b16 %v500
    %v534 = vunpack.c.l.b16 %v501
    %v535 = vunpack.c.l.b16 %v502
    %v536 = vpack.c.b16 %v521, %v520
    %v537 = vpack.c.b16 %v523, %v522
    %v538 = vpack.c.b16 %v525, %v524
    %v539 = vpack.c.b16 %v527, %v526
    %v540 = vpack.c.b16 %v529, %v528
    %v541 = vpack.c.b16 %v531, %v530
    %v542 = vpack.c.b16 %v533, %v532
    %v543 = vpack.c.b16 %v535, %v534
    %552 = vmatprep.subr.bf16.mxu0 0
    %553 = vmatpush1.bf16.msra.mxu0 %v536
    %554 = vmatprep.subr.bf16.mxu0 0
    %555 = vmatpush1.bf16.msra.mxu0 %v537
    %556 = vmatprep.subr.bf16.mxu0 0
    %557 = vmatpush1.bf16.msra.mxu0 %v538
    %558 = vmatprep.subr.bf16.mxu0 0
    %559 = vmatpush1.bf16.msra.mxu0 %v539
    %560 = vmatprep.subr.bf16.mxu0 0
    %561 = vmatpush1.bf16.msra.mxu0 %v540
    %562 = vmatprep.subr.bf16.mxu0 0
    %563 = vmatpush1.bf16.msra.mxu0 %v541
    %564 = vmatprep.subr.bf16.mxu0 0
    %565 = vmatpush1.bf16.msra.mxu0 %v542
    %566 = vmatprep.subr.bf16.mxu0 0
    %567 = vmatpush1.bf16.msra.mxu0 %v543
    %568 = vmatprep.subr.bf16.mxu0 0
    %569 = vmatpush1.bf16.msra.mxu0 0
    %570 = vmatprep.subr.bf16.mxu0 0
    %571 = vmatpush1.bf16.msra.mxu0 0
    %572 = vmatprep.subr.bf16.mxu0 0
    %573 = vmatpush1.bf16.msra.mxu0 0
    %574 = vmatprep.subr.bf16.mxu0 0
    %575 = vmatpush1.bf16.msra.mxu0 0
    %576 = vmatprep.subr.bf16.mxu0 0
    %577 = vmatpush1.bf16.msra.mxu0 0
    %578 = vmatprep.subr.bf16.mxu0 0
    %579 = vmatpush1.bf16.msra.mxu0 0
    %580 = vmatprep.subr.bf16.mxu0 0
    %581 = vmatpush1.bf16.msra.mxu0 0
    %582 = vmatprep.subr.bf16.mxu0 0
    %583 = vmatpush1.bf16.msra.mxu0 0
    %584 = vmatprep.mubr.bf16.mxu0 0
    %585 = vmatmul.mubr.bf16.gmra.mrb[0].mxu0 %v486
    %v586 = vpop.f32.mrb[0].mxu0
    %v587 = vadd.f32 %v503, %v586
    %v588 = vpop.f32.mrb[0].mxu0
    %v589 = vpop.f32.mrb[0].mxu0
    %v590 = vpop.f32.mrb[0].mxu0
    %591 = vdwg.mxu0
    %v592 = vpack.c.bf16 %v587, %v587
    %v593 = vmul.bf16 %v592, 1009007652
    %v594 = vmax.bf16 %v592, %v593
    %v595 = vld [vmem:[#allocation8] sm:$0xf]
    %v596 = vld [vmem:[#allocation8 + $0x4] sm:$0xf]
    %v597 = vld [vmem:[#allocation8 + $0x8] sm:$0xf]
    %v598 = vld [vmem:[#allocation8 + $0xc] sm:$0xf]
    %v599 = vld [vmem:[#allocation8 + $0x10] sm:$0xf]
    %v600 = vld [vmem:[#allocation8 + $0x14] sm:$0xf]
    %v601 = vld [vmem:[#allocation8 + $0x18] sm:$0xf]
    %v602 = vld [vmem:[#allocation8 + $0x1c] sm:$0xf]
    %v603 = vld [vmem:[#allocation8 + $0x20] sm:$0xf]
    %v604 = vld [vmem:[#allocation8 + $0x24] sm:$0xf]
    %v605 = vld [vmem:[#allocation8 + $0x28] sm:$0xf]
    %v606 = vld [vmem:[#allocation8 + $0x2c] sm:$0xf]
    %v607 = vld [vmem:[#allocation8 + $0x30] sm:$0xf]
    %v608 = vld [vmem:[#allocation8 + $0x34] sm:$0xf]
    %v609 = vld [vmem:[#allocation8 + $0x38] sm:$0xf]
    %v610 = vld [vmem:[#allocation8 + $0x3c] sm:$0xf]
    %v611 = vld [vmem:[%s9 + $0x4] ss:$0 sm:$0xff]
    %v628 = vunpack.c.l.b16 %v595
    %v629 = vunpack.c.l.b16 %v596
    %v630 = vunpack.c.l.b16 %v597
    %v631 = vunpack.c.l.b16 %v598
    %v632 = vunpack.c.l.b16 %v599
    %v633 = vunpack.c.l.b16 %v600
    %v634 = vunpack.c.l.b16 %v601
    %v635 = vunpack.c.l.b16 %v602
    %v636 = vunpack.c.l.b16 %v603
    %v637 = vunpack.c.l.b16 %v604
    %v638 = vunpack.c.l.b16 %v605
    %v639 = vunpack.c.l.b16 %v606
    %v640 = vunpack.c.l.b16 %v607
    %v641 = vunpack.c.l.b16 %v608
    %v642 = vunpack.c.l.b16 %v609
    %v643 = vunpack.c.l.b16 %v610
    %v644 = vpack.c.b16 %v629, %v628
    %v645 = vpack.c.b16 %v631, %v630
    %v646 = vpack.c.b16 %v633, %v632
    %v647 = vpack.c.b16 %v635, %v634
    %v648 = vpack.c.b16 %v637, %v636
    %v649 = vpack.c.b16 %v639, %v638
    %v650 = vpack.c.b16 %v641, %v640
    %v651 = vpack.c.b16 %v643, %v642
    %660 = vmatprep.subr.bf16.mxu0 0
    %661 = vmatpush1.bf16.msra.mxu0 %v644
    %662 = vmatprep.subr.bf16.mxu0 0
    %663 = vmatpush1.bf16.msra.mxu0 %v645
    %664 = vmatprep.subr.bf16.mxu0 0
    %665 = vmatpush1.bf16.msra.mxu0 %v646
    %666 = vmatprep.subr.bf16.mxu0 0
    %667 = vmatpush1.bf16.msra.mxu0 %v647
    %668 = vmatprep.subr.bf16.mxu0 0
    %669 = vmatpush1.bf16.msra.mxu0 %v648
    %670 = vmatprep.subr.bf16.mxu0 0
    %671 = vmatpush1.bf16.msra.mxu0 %v649
    %672 = vmatprep.subr.bf16.mxu0 0
    %673 = vmatpush1.bf16.msra.mxu0 %v650
    %674 = vmatprep.subr.bf16.mxu0 0
    %675 = vmatpush1.bf16.msra.mxu0 %v651
    %676 = vmatprep.subr.bf16.mxu0 0
    %677 = vmatpush1.bf16.msra.mxu0 0
    %678 = vmatprep.subr.bf16.mxu0 0
    %679 = vmatpush1.bf16.msra.mxu0 0
    %680 = vmatprep.subr.bf16.mxu0 0
    %681 = vmatpush1.bf16.msra.mxu0 0
    %682 = vmatprep.subr.bf16.mxu0 0
    %683 = vmatpush1.bf16.msra.mxu0 0
    %684 = vmatprep.subr.bf16.mxu0 0
    %685 = vmatpush1.bf16.msra.mxu0 0
    %686 = vmatprep.subr.bf16.mxu0 0
    %687 = vmatpush1.bf16.msra.mxu0 0
    %688 = vmatprep.subr.bf16.mxu0 0
    %689 = vmatpush1.bf16.msra.mxu0 0
    %690 = vmatprep.subr.bf16.mxu0 0
    %691 = vmatpush1.bf16.msra.mxu0 0
    %692 = vmatprep.mubr.bf16.mxu0 0
    %693 = vmatmul.mubr.bf16.gmra.mrb[0].mxu0 %v594
    %v694 = vpop.f32.mrb[0].mxu0
    %v695 = vadd.f32 %v611, %v694
    %v696 = vpop.f32.mrb[0].mxu0
    %v697 = vpop.f32.mrb[0].mxu0
    %v698 = vpop.f32.mrb[0].mxu0
    %699 = vdwg.mxu0
    %v700 = vpack.c.bf16 %v695, %v695
    %v701 = vmul.bf16 %v700, 1009007652
    %v702 = vmax.bf16 %v700, %v701
    %v703 = vld [vmem:[#allocation10] sm:$0xf]
    %v704 = vld [vmem:[#allocation10 + $0x4] sm:$0xf]
    %v705 = vld [vmem:[#allocation10 + $0x8] sm:$0xf]
    %v706 = vld [vmem:[#allocation10 + $0xc] sm:$0xf]
    %v707 = vld [vmem:[#allocation10 + $0x10] sm:$0xf]
    %v708 = vld [vmem:[#allocation10 + $0x14] sm:$0xf]
    %v709 = vld [vmem:[#allocation10 + $0x18] sm:$0xf]
    %v710 = vld [vmem:[#allocation10 + $0x1c] sm:$0xf]
    %v711 = vld [vmem:[#allocation10 + $0x20] sm:$0xf]
    %v712 = vld [vmem:[#allocation10 + $0x24] sm:$0xf]
    %v713 = vld [vmem:[#allocation10 + $0x28] sm:$0xf]
    %v714 = vld [vmem:[#allocation10 + $0x2c] sm:$0xf]
    %v715 = vld [vmem:[#allocation10 + $0x30] sm:$0xf]
    %v716 = vld [vmem:[#allocation10 + $0x34] sm:$0xf]
    %v717 = vld [vmem:[#allocation10 + $0x38] sm:$0xf]
    %v718 = vld [vmem:[#allocation10 + $0x3c] sm:$0xf]
    %v719 = vld [vmem:[%s9 + $0x5] ss:$0 sm:$0xff]
    %v736 = vunpack.c.l.b16 %v703
    %v737 = vunpack.c.l.b16 %v704
    %v738 = vunpack.c.l.b16 %v705
    %v739 = vunpack.c.l.b16 %v706
    %v740 = vunpack.c.l.b16 %v707
    %v741 = vunpack.c.l.b16 %v708
    %v742 = vunpack.c.l.b16 %v709
    %v743 = vunpack.c.l.b16 %v710
    %v744 = vunpack.c.l.b16 %v711
    %v745 = vunpack.c.l.b16 %v712
    %v746 = vunpack.c.l.b16 %v713
    %v747 = vunpack.c.l.b16 %v714
    %v748 = vunpack.c.l.b16 %v715
    %v749 = vunpack.c.l.b16 %v716
    %v750 = vunpack.c.l.b16 %v717
    %v751 = vunpack.c.l.b16 %v718
    %v752 = vpack.c.b16 %v737, %v736
    %v753 = vpack.c.b16 %v739, %v738
    %v754 = vpack.c.b16 %v741, %v740
    %v755 = vpack.c.b16 %v743, %v742
    %v756 = vpack.c.b16 %v745, %v744
    %v757 = vpack.c.b16 %v747, %v746
    %v758 = vpack.c.b16 %v749, %v748
    %v759 = vpack.c.b16 %v751, %v750
    %768 = vmatprep.subr.bf16.mxu0 0
    %769 = vmatpush1.bf16.msra.mxu0 %v752
    %770 = vmatprep.subr.bf16.mxu0 0
    %771 = vmatpush1.bf16.msra.mxu0 %v753
    %772 = vmatprep.subr.bf16.mxu0 0
    %773 = vmatpush1.bf16.msra.mxu0 %v754
    %774 = vmatprep.subr.bf16.mxu0 0
    %775 = vmatpush1.bf16.msra.mxu0 %v755
    %776 = vmatprep.subr.bf16.mxu0 0
    %777 = vmatpush1.bf16.msra.mxu0 %v756
    %778 = vmatprep.subr.bf16.mxu0 0
    %779 = vmatpush1.bf16.msra.mxu0 %v757
    %780 = vmatprep.subr.bf16.mxu0 0
    %781 = vmatpush1.bf16.msra.mxu0 %v758
    %782 = vmatprep.subr.bf16.mxu0 0
    %783 = vmatpush1.bf16.msra.mxu0 %v759
    %784 = vmatprep.subr.bf16.mxu0 0
    %785 = vmatpush1.bf16.msra.mxu0 0
    %786 = vmatprep.subr.bf16.mxu0 0
    %787 = vmatpush1.bf16.msra.mxu0 0
    %788 = vmatprep.subr.bf16.mxu0 0
    %789 = vmatpush1.bf16.msra.mxu0 0
    %790 = vmatprep.subr.bf16.mxu0 0
    %791 = vmatpush1.bf16.msra.mxu0 0
    %792 = vmatprep.subr.bf16.mxu0 0
    %793 = vmatpush1.bf16.msra.mxu0 0
    %794 = vmatprep.subr.bf16.mxu0 0
    %795 = vmatpush1.bf16.msra.mxu0 0
    %796 = vmatprep.subr.bf16.mxu0 0
    %797 = vmatpush1.bf16.msra.mxu0 0
    %798 = vmatprep.subr.bf16.mxu0 0
    %799 = vmatpush1.bf16.msra.mxu0 0
    %800 = vmatprep.mubr.bf16.mxu0 0
    %801 = vmatmul.mubr.bf16.gmra.mrb[0].mxu0 %v702
    %v802 = vpop.f32.mrb[0].mxu0
    %v803 = vadd.f32 %v719, %v802
    %v804 = vpop.f32.mrb[0].mxu0
    %v805 = vpop.f32.mrb[0].mxu0
    %v806 = vpop.f32.mrb[0].mxu0
    %807 = vdwg.mxu0
    %v808 = vpack.c.bf16 %v803, %v803
    %v809 = vmul.bf16 %v808, 1009007652
    %v810 = vmax.bf16 %v808, %v809
    %v811 = vld [vmem:[#allocation11] sm:$0xff]
    %v812 = vld [vmem:[#allocation11 + $0x8] sm:$0xff]
    %v813 = vld [vmem:[#allocation11 + $0x10] sm:$0xff]
    %v814 = vld [vmem:[#allocation11 + $0x18] sm:$0xff]
    %v815 = vld [vmem:[#allocation11 + $0x20] sm:$0xff]
    %v816 = vld [vmem:[#allocation11 + $0x28] sm:$0xff]
    %v817 = vld [vmem:[#allocation11 + $0x30] sm:$0xff]
    %v818 = vld [vmem:[#allocation11 + $0x38] sm:$0xff]
    %v819 = vld [vmem:[#allocation11 + $0x40] sm:$0xff]
    %v820 = vld [vmem:[#allocation11 + $0x48] sm:$0xff]
    %v821 = vld [vmem:[#allocation11 + $0x50] sm:$0xff]
    %v822 = vld [vmem:[#allocation11 + $0x58] sm:$0xff]
    %v823 = vld [vmem:[#allocation11 + $0x60] sm:$0xff]
    %v824 = vld [vmem:[#allocation11 + $0x68] sm:$0xff]
    %v825 = vld [vmem:[#allocation11 + $0x70] sm:$0xff]
    %v826 = vld [vmem:[#allocation11 + $0x78] sm:$0xff]
    %s827 = scalar_lea.vmem %s9, 6
    %v828 = vld [vmem:[%s827] ss:$8 sm:$0x3]
    %v830 = vlaneseq
    %v831 = vshrl.u32 %v830, 7
    %v832 = vsub.s32 0, %v831
    %v833 = vrot.slane %v828, %v832
    %v834 = vlaneseq
    %v835 = vshrl.u32 %v834, 7
    %v836 = vsub.s32 1, %v835
    %v837 = vrot.slane %v828, %v836
    %v856 = vunpack.c.l.b16 %v811
    %v857 = vunpack.c.h.b16 %v811
    %v858 = vunpack.c.l.b16 %v812
    %v859 = vunpack.c.h.b16 %v812
    %v860 = vunpack.c.l.b16 %v813
    %v861 = vunpack.c.h.b16 %v813
    %v862 = vunpack.c.l.b16 %v814
    %v863 = vunpack.c.h.b16 %v814
    %v864 = vunpack.c.l.b16 %v815
    %v865 = vunpack.c.h.b16 %v815
    %v866 = vunpack.c.l.b16 %v816
    %v867 = vunpack.c.h.b16 %v816
    %v868 = vunpack.c.l.b16 %v817
    %v869 = vunpack.c.h.b16 %v817
    %v870 = vunpack.c.l.b16 %v818
    %v871 = vunpack.c.h.b16 %v818
    %v872 = vunpack.c.l.b16 %v819
    %v873 = vunpack.c.h.b16 %v819
    %v874 = vunpack.c.l.b16 %v820
    %v875 = vunpack.c.h.b16 %v820
    %v876 = vunpack.c.l.b16 %v821
    %v877 = vunpack.c.h.b16 %v821
    %v878 = vunpack.c.l.b16 %v822
    %v879 = vunpack.c.h.b16 %v822
    %v880 = vunpack.c.l.b16 %v823
    %v881 = vunpack.c.h.b16 %v823
    %v882 = vunpack.c.l.b16 %v824
    %v883 = vunpack.c.h.b16 %v824
    %v884 = vunpack.c.l.b16 %v825
    %v885 = vunpack.c.h.b16 %v825
    %v886 = vunpack.c.l.b16 %v826
    %v887 = vunpack.c.h.b16 %v826
    %v888 = vpack.c.b16 %v858, %v856
    %v889 = vpack.c.b16 %v859, %v857
    %v890 = vpack.c.b16 %v862, %v860
    %v891 = vpack.c.b16 %v863, %v861
    %v892 = vpack.c.b16 %v866, %v864
    %v893 = vpack.c.b16 %v867, %v865
    %v894 = vpack.c.b16 %v870, %v868
    %v895 = vpack.c.b16 %v871, %v869
    %v896 = vpack.c.b16 %v874, %v872
    %v897 = vpack.c.b16 %v875, %v873
    %v898 = vpack.c.b16 %v878, %v876
    %v899 = vpack.c.b16 %v879, %v877
    %v900 = vpack.c.b16 %v882, %v880
    %v901 = vpack.c.b16 %v883, %v881
    %v902 = vpack.c.b16 %v886, %v884
    %v903 = vpack.c.b16 %v887, %v885
    %920 = vmatprep.subr.bf16.mxu0 %v889
    %921 = vmatpush1.bf16.msra.mxu0 %v888
    %922 = vmatprep.subr.bf16.mxu0 %v891
    %923 = vmatpush1.bf16.msra.mxu0 %v890
    %924 = vmatprep.subr.bf16.mxu0 %v893
    %925 = vmatpush1.bf16.msra.mxu0 %v892
    %926 = vmatprep.subr.bf16.mxu0 %v895
    %927 = vmatpush1.bf16.msra.mxu0 %v894
    %928 = vmatprep.subr.bf16.mxu0 %v897
    %929 = vmatpush1.bf16.msra.mxu0 %v896
    %930 = vmatprep.subr.bf16.mxu0 %v899
    %931 = vmatpush1.bf16.msra.mxu0 %v898
    %932 = vmatprep.subr.bf16.mxu0 %v901
    %933 = vmatpush1.bf16.msra.mxu0 %v900
    %934 = vmatprep.subr.bf16.mxu0 %v903
    %935 = vmatpush1.bf16.msra.mxu0 %v902
    %936 = vmatprep.subr.bf16.mxu0 0
    %937 = vmatpush1.bf16.msra.mxu0 0
    %938 = vmatprep.subr.bf16.mxu0 0
    %939 = vmatpush1.bf16.msra.mxu0 0
    %940 = vmatprep.subr.bf16.mxu0 0
    %941 = vmatpush1.bf16.msra.mxu0 0
    %942 = vmatprep.subr.bf16.mxu0 0
    %943 = vmatpush1.bf16.msra.mxu0 0
    %944 = vmatprep.subr.bf16.mxu0 0
    %945 = vmatpush1.bf16.msra.mxu0 0
    %946 = vmatprep.subr.bf16.mxu0 0
    %947 = vmatpush1.bf16.msra.mxu0 0
    %948 = vmatprep.subr.bf16.mxu0 0
    %949 = vmatpush1.bf16.msra.mxu0 0
    %950 = vmatprep.subr.bf16.mxu0 0
    %951 = vmatpush1.bf16.msra.mxu0 0
    %952 = vmatprep.mubr.bf16.mxu0 0
    %953 = vmatmul.mubr.bf16.gmra.mrb[0].mxu0 %v810
    %v954 = vpop.f32.mrb[0].mxu0
    %v955 = vadd.f32 %v833, %v954
    %v956 = vpop.f32.mrb[0].mxu0
    %v957 = vadd.f32 %v837, %v956
    %v958 = vpop.f32.mrb[0].mxu0
    %v959 = vpop.f32.mrb[0].mxu0
    %960 = vdwg.mxu0
    %v961 = vpack.c.bf16 %v955, %v955
    %v962 = vpack.c.bf16 %v957, %v957
    %v963 = vmul.bf16 %v961, 1009007652
    %v964 = vmul.bf16 %v962, 1009007652
    %v965 = vmax.bf16 %v961, %v963
    %v966 = vmax.bf16 %v962, %v964
    %v967 = vld [vmem:[%s8] sm:$0xf]
    %v968 = vld [vmem:[%s8 + $0x4] sm:$0xf]
    %v969 = vld [vmem:[%s8 + $0x8] sm:$0xf]
    %v970 = vld [vmem:[%s8 + $0xc] sm:$0xf]
    %v971 = vld [vmem:[%s8 + $0x10] sm:$0xf]
    %v972 = vld [vmem:[%s8 + $0x14] sm:$0xf]
    %v973 = vld [vmem:[%s8 + $0x18] sm:$0xf]
    %v974 = vld [vmem:[%s8 + $0x1c] sm:$0xf]
    %v975 = vld [vmem:[%s8 + $0x20] sm:$0xf]
    %v976 = vld [vmem:[%s8 + $0x24] sm:$0xf]
    %v977 = vld [vmem:[%s8 + $0x28] sm:$0xf]
    %v978 = vld [vmem:[%s8 + $0x2c] sm:$0xf]
    %v979 = vld [vmem:[%s8 + $0x30] sm:$0xf]
    %v980 = vld [vmem:[%s8 + $0x34] sm:$0xf]
    %v981 = vld [vmem:[%s8 + $0x38] sm:$0xf]
    %v982 = vld [vmem:[%s8 + $0x3c] sm:$0xf]
    %v983 = vld [vmem:[%s8 + $0x40] sm:$0xf]
    %v984 = vld [vmem:[%s8 + $0x44] sm:$0xf]
    %v985 = vld [vmem:[%s8 + $0x48] sm:$0xf]
    %v986 = vld [vmem:[%s8 + $0x4c] sm:$0xf]
    %v987 = vld [vmem:[%s8 + $0x50] sm:$0xf]
    %v988 = vld [vmem:[%s8 + $0x54] sm:$0xf]
    %v989 = vld [vmem:[%s8 + $0x58] sm:$0xf]
    %v990 = vld [vmem:[%s8 + $0x5c] sm:$0xf]
    %v991 = vld [vmem:[%s8 + $0x60] sm:$0xf]
    %v992 = vld [vmem:[%s8 + $0x64] sm:$0xf]
    %v993 = vld [vmem:[%s8 + $0x68] sm:$0xf]
    %v994 = vld [vmem:[%s8 + $0x6c] sm:$0xf]
    %v995 = vld [vmem:[%s8 + $0x70] sm:$0xf]
    %v996 = vld [vmem:[%s8 + $0x74] sm:$0xf]
    %v997 = vld [vmem:[%s8 + $0x78] sm:$0xf]
    %v998 = vld [vmem:[%s8 + $0x7c] sm:$0xf]
    %v999 = vld [vmem:[%s9 + $0x7] ss:$0 sm:$0xff]
    %v1032 = vunpack.c.l.b16 %v967
    %v1033 = vunpack.c.l.b16 %v968
    %v1034 = vunpack.c.l.b16 %v969
    %v1035 = vunpack.c.l.b16 %v970
    %v1036 = vunpack.c.l.b16 %v971
    %v1037 = vunpack.c.l.b16 %v972
    %v1038 = vunpack.c.l.b16 %v973
    %v1039 = vunpack.c.l.b16 %v974
    %v1040 = vunpack.c.l.b16 %v975
    %v1041 = vunpack.c.l.b16 %v976
    %v1042 = vunpack.c.l.b16 %v977
    %v1043 = vunpack.c.l.b16 %v978
    %v1044 = vunpack.c.l.b16 %v979
    %v1045 = vunpack.c.l.b16 %v980
    %v1046 = vunpack.c.l.b16 %v981
    %v1047 = vunpack.c.l.b16 %v982
    %v1048 = vunpack.c.l.b16 %v983
    %v1049 = vunpack.c.l.b16 %v984
    %v1050 = vunpack.c.l.b16 %v985
    %v1051 = vunpack.c.l.b16 %v986
    %v1052 = vunpack.c.l.b16 %v987
    %v1053 = vunpack.c.l.b16 %v988
    %v1054 = vunpack.c.l.b16 %v989
    %v1055 = vunpack.c.l.b16 %v990
    %v1056 = vunpack.c.l.b16 %v991
    %v1057 = vunpack.c.l.b16 %v992
    %v1058 = vunpack.c.l.b16 %v993
    %v1059 = vunpack.c.l.b16 %v994
    %v1060 = vunpack.c.l.b16 %v995
    %v1061 = vunpack.c.l.b16 %v996
    %v1062 = vunpack.c.l.b16 %v997
    %v1063 = vunpack.c.l.b16 %v998
    %v1064 = vpack.c.b16 %v1033, %v1032
    %v1065 = vpack.c.b16 %v1035, %v1034
    %v1066 = vpack.c.b16 %v1037, %v1036
    %v1067 = vpack.c.b16 %v1039, %v1038
    %v1068 = vpack.c.b16 %v1041, %v1040
    %v1069 = vpack.c.b16 %v1043, %v1042
    %v1070 = vpack.c.b16 %v1045, %v1044
    %v1071 = vpack.c.b16 %v1047, %v1046
    %v1072 = vpack.c.b16 %v1049, %v1048
    %v1073 = vpack.c.b16 %v1051, %v1050
    %v1074 = vpack.c.b16 %v1053, %v1052
    %v1075 = vpack.c.b16 %v1055, %v1054
    %v1076 = vpack.c.b16 %v1057, %v1056
    %v1077 = vpack.c.b16 %v1059, %v1058
    %v1078 = vpack.c.b16 %v1061, %v1060
    %v1079 = vpack.c.b16 %v1063, %v1062
    %1096 = vmatprep.subr.bf16.mxu0 0
    %1097 = vmatpush1.bf16.msra.mxu0 %v1064
    %1098 = vmatprep.subr.bf16.mxu0 0
    %1099 = vmatpush1.bf16.msra.mxu0 %v1065
    %1100 = vmatprep.subr.bf16.mxu0 0
    %1101 = vmatpush1.bf16.msra.mxu0 %v1066
    %1102 = vmatprep.subr.bf16.mxu0 0
    %1103 = vmatpush1.bf16.msra.mxu0 %v1067
    %1104 = vmatprep.subr.bf16.mxu0 0
    %1105 = vmatpush1.bf16.msra.mxu0 %v1068
    %1106 = vmatprep.subr.bf16.mxu0 0
    %1107 = vmatpush1.bf16.msra.mxu0 %v1069
    %1108 = vmatprep.subr.bf16.mxu0 0
    %1109 = vmatpush1.bf16.msra.mxu0 %v1070
    %1110 = vmatprep.subr.bf16.mxu0 0
    %1111 = vmatpush1.bf16.msra.mxu0 %v1071
    %1112 = vmatprep.subr.bf16.mxu0 0
    %1113 = vmatpush1.bf16.msra.mxu0 %v1072
    %1114 = vmatprep.subr.bf16.mxu0 0
    %1115 = vmatpush1.bf16.msra.mxu0 %v1073
    %1116 = vmatprep.subr.bf16.mxu0 0
    %1117 = vmatpush1.bf16.msra.mxu0 %v1074
    %1118 = vmatprep.subr.bf16.mxu0 0
    %1119 = vmatpush1.bf16.msra.mxu0 %v1075
    %1120 = vmatprep.subr.bf16.mxu0 0
    %1121 = vmatpush1.bf16.msra.mxu0 %v1076
    %1122 = vmatprep.subr.bf16.mxu0 0
    %1123 = vmatpush1.bf16.msra.mxu0 %v1077
    %1124 = vmatprep.subr.bf16.mxu0 0
    %1125 = vmatpush1.bf16.msra.mxu0 %v1078
    %1126 = vmatprep.subr.bf16.mxu0 0
    %1127 = vmatpush1.bf16.msra.mxu0 %v1079
    %1128 = vmatprep.mubr.bf16.mxu0 %v966
    %1129 = vmatmul.mubr.bf16.gmra.mrb[0].mxu0 %v965
    %v1130 = vpop.f32.mrb[0].mxu0
    %v1131 = vadd.f32 %v999, %v1130
    %v1132 = vpop.f32.mrb[0].mxu0
    %v1133 = vpop.f32.mrb[0].mxu0
    %v1134 = vpop.f32.mrb[0].mxu0
    %1135 = vdwg.mxu0
    %v1136 = vmax.f32 %v1131, 0.0
    %1137 = vst.msk [vmem:[#allocation13] sm:$0xff] %vm156, %v1136
    // Predicated region
    $region66: #{sae_forward.1} parent=1 // pred_check
      _
    $region67: #{sae_forward.1} parent=1 // pred_check_branch
      %1139 = sbr.rel (0) target = $region69
    $region68: #{sae_forward.1} parent=1 // pred_region
      %s1141 = ssub.s32 128, 128
      %1142 = vsyncadd [#allocation4], %s1141
      %s1144 = sshll.u32 [#allocation13], 4
      %s1145 = int_to_ptr.vmem [resolvable:$true] %s1144
      %1147 = dma.vmem_to_hbm [thread:$0]  %s1145, 128, %s10, [#allocation4]
    $region69: #{sae_forward.1} parent=1 // pred_fallthru
      _
    // Predicated region
    $region70: #{sae_forward.1} parent=1 // pred_check
      _
    $region71: #{sae_forward.1} parent=1 // pred_check_branch
      %1149 = sbr.rel (0) target = $region73
    $region72: #{sae_forward.1} parent=1 // pred_region
      %1150 = dma.done [#allocation4], 128
    $region73: #{sae_forward.1} parent=1 // pred_fallthru
      _
    %1151 = vsyncpa [#allocation3], 1
    %1152 = vsyncpa [#allocation6], 1
    %1153 = vsyncpa [#allocation9], 1
    %1154 = vsyncpa [#allocation12], 1
    %1155 = vsyncpa [#allocation4], 1

</llo_original>
